<compile_context>
chip_gen: v6e
topology: v6e:2x2x1
jax: 0.10.0
libtpu: 0.0.40
codegen_flags: <defaults>
</compile_context>

<pallas_src>
import jax
import jax.numpy as jnp
from jax.experimental import pallas as pl
from jax.experimental.pallas import tpu as pltpu

K_CONST = 1.4142              # self.k
N_BITS = 14                   # self.n
COEFF0 = -0.2888              # self.coeff[0]
COEFF1 = -1.769               # self.coeff[1]
COEFF2 = 1.0 / COEFF0         # self.coeff[2] /= self.coeff[0]
TWO_POW_N = float(2 ** N_BITS)
INV_TWO_POW_N = 1.0 / TWO_POW_N   # exact power of two
INV_128 = 1.0 / 128.0             # exact power of two (2^-7; (2^-7)^2 = 2^-14)

MAX_BLOCK_ELEMS = 1 << 20         # ~4 MiB of f32 per pipeline buffer
LANE_CANDIDATES = (2048, 1024, 512, 256, 128)


def _int_gelu_kernel(c_ref, x_ref, o_ref):
    """Elementwise quantized-GELU hot path.

    c_ref: (5,) float32 scalar-prefetch SMEM ref with pre-folded constants
           [inv_sf/128, b_int/128, c_int/2^14, shift_int, out_sf*128]
    x_ref: (block_rows, lane_w) VMEM tile (native dtype)
    o_ref: (block_rows, lane_w) VMEM tile (native dtype)
    """
    inv_sf_s = c_ref[0]
    b_s = c_ref[1]
    c_s = c_ref[2]
    shift_int = c_ref[3]
    out_sf_s = c_ref[4]

    # Vector path (VPU only, no divides, no jnp.sign, no separate 2^-14 mul).
    # All power-of-two rescalings are exact, so this is bit-identical to the
    # unfolded math in the PyTorch module (modulo x*(1/sf) vs x/sf, <= 1 ulp).
    x = x_ref[...].astype(jnp.float32)
    x_s = x * inv_sf_s                          # = x_int / 128
    abs_s = jnp.minimum(jnp.abs(x_s), -b_s)     # = min(|x_int|, -b_int) / 128
    t = abs_s + b_s                             # = (abs_int + b_int) / 128
    q = t * t + c_s                             # = ((abs_int+b_int)^2 + c_int) / 2^14
    # sign(x)*q then floor; x==0 gives q (not 0) but the final multiply by
    # x_s == 0 still yields exactly 0, matching the reference.
    y = jnp.floor(jnp.where(x_s < 0.0, -q, q))  # = floor(sign * y_int / 2^14)
    o_ref[...] = ((x_s * (y + shift_int)) * out_sf_s).astype(o_ref.dtype)


def int_gelu(x, scaling_factor=None, quant_mode="symmetric"):
    """JAX/Pallas equivalent of IntGELU.forward."""
    if quant_mode == "none" or scaling_factor is None:
        # 'none' mode == stock exact-erf GELU (nn.GELU()); plain XLA op.
        return jax.nn.gelu(x, approximate=False)

    assert quant_mode == "symmetric", f"unsupported quant mode: {quant_mode}"

    orig_shape = x.shape
    orig_dtype = x.dtype
    total = int(x.size)
    itemsize = jnp.dtype(orig_dtype).itemsize

    # --- hoisted scalar constants (same math as the PyTorch module) with the
    #     2^-14 scale folded in via exact power-of-two rescaling. ---
    sf = jnp.asarray(scaling_factor, jnp.float32).reshape(())
    s_erf = sf / K_CONST                              # scaling_factor / self.k
    b_int = jnp.floor(COEFF1 / s_erf)
    c_int = jnp.floor(COEFF2 / (s_erf * s_erf))
    sigmoid_sf = (s_erf * s_erf) * COEFF0 * TWO_POW_N
    shift_int = jnp.floor(1.0 / sigmoid_sf)
    out_sf = sf * sigmoid_sf * 0.5
    inv_sf = 1.0 / sf
    consts = jnp.stack([inv_sf * INV_128,
                        b_int * INV_128,
                        c_int * INV_TWO_POW_N,
                        shift_int,
                        out_sf * 128.0]).astype(jnp.float32)

    # --- lane-dense 2-D layout; zero-copy (no pad / no slice) common path. ---
    last = int(orig_shape[-1]) if x.ndim >= 1 else 1
    pad = 0
    if total >= 128 and total % 128 == 0:
        if x.ndim >= 2 and last % 128 == 0 and 512 <= last <= 8192:
            lane_w = last                             # hidden dim is lane-dense
        else:
            lane_w = next(c for c in LANE_CANDIDATES if total % c == 0)
        rows = total // lane_w
        x2 = x.reshape(rows, lane_w)                  # contiguous reshape, no copy
    else:
        # TODO(synk): rare ragged-total fallback still pads in XLA (extra copy);
        # an in-kernel masked tail store would avoid it but is not worth the
        # complexity for non-128-multiple activation sizes.
        lane_w = min(1024, ((total + 127) // 128) * 128)
        rows = -(-total // lane_w)
        pad = rows * lane_w - total
        x2 = jnp.pad(x.reshape(-1), (0, pad)).reshape(rows, lane_w)

    # --- block sizing: big tiles, dtype-aware sublane rounding, and >= 2 grid
    #     steps whenever possible so v7x's two TensorCores both get work. ---
    sublane_mult = max(8, 32 // itemsize)             # 8 f32, 16 bf16, 32 int8
    if rows <= 2 * sublane_mult:
        block_rows = rows                             # full array = single block
    else:
        target_rows = max(sublane_mult, MAX_BLOCK_ELEMS // lane_w)
        half_cap = max(sublane_mult,
                       ((rows + 1) // 2) // sublane_mult * sublane_mult)
        block_rows = min(target_rows, half_cap)
        block_rows = max(sublane_mult, block_rows // sublane_mult * sublane_mult)
    grid = (pl.cdiv(rows, block_rows),)

    # VMEM budget: double-buffered in/out tiles (native dtype) + ~4 live f32
    # temporaries in the elementwise chain + slack; stays under v7x's 64 MiB.
    vmem_est = block_rows * lane_w * (4 * itemsize + 16) + (4 << 20)
    vmem_limit = int(min(max(vmem_est, 32 << 20), 48 << 20))

    out = pl.pallas_call(
        _int_gelu_kernel,
        out_shape=jax.ShapeDtypeStruct((rows, lane_w), orig_dtype),
        grid_spec=pltpu.PrefetchScalarGridSpec(
            num_scalar_prefetch=1,                    # consts -> SMEM once, pre-grid
            grid=grid,
            in_specs=[pl.BlockSpec((block_rows, lane_w), lambda i, c: (i, 0))],
            out_specs=pl.BlockSpec((block_rows, lane_w), lambda i, c: (i, 0)),
        ),
        compiler_params=pltpu.CompilerParams(
            dimension_semantics=("parallel",),
            vmem_limit_bytes=vmem_limit,
        ),
    )(consts, x2)

    if pad:
        return out.reshape(-1)[:total].reshape(orig_shape)
    return out.reshape(orig_shape)


def _int_gelu_reference(x, sf):
    """Pure-JAX replica of the PyTorch forward (symmetric mode)."""
    x = x.astype(jnp.float32)
    sf = jnp.float32(sf)
    x_int = x / sf
    s_erf = sf / K_CONST
    b_int = jnp.floor(COEFF1 / s_erf)
    c_int = jnp.floor(COEFF2 / s_erf ** 2)
    sign = jnp.sign(x_int)
    abs_int = jnp.minimum(jnp.abs(x_int), -b_int)
    y_int = sign * ((abs_int + b_int) ** 2 + c_int)
    sig_sf = s_erf ** 2 * COEFF0
    y_int = jnp.floor(y_int / 2 ** N_BITS)
    sig_sf = sig_sf * 2 ** N_BITS
    shift_int = jnp.floor(1.0 / sig_sf)
    x_int = x_int * (y_int + shift_int)
    out_sf = sf * sig_sf / 2
    return x_int * out_sf


if __name__ == "__main__":
    key = jax.random.PRNGKey(0)
    scaling_factor = jnp.float32(0.02)   # typical activation scale

    # Test 1: f32, (batch, seq, hidden) — zero-copy single-block path.
    batch, seq, hidden = 2, 8, 32
    x = jax.random.normal(key, (batch, seq, hidden), dtype=jnp.float32) * 2.0
    y = jax.block_until_ready(int_gelu(x, scaling_factor, quant_mode="symmetric"))
    y_ref = _int_gelu_reference(x, scaling_factor)
    assert y.shape == x.shape and y.dtype == x.dtype
    assert jnp.allclose(y, y_ref, rtol=1e-5, atol=1e-5), "f32 mismatch vs reference"

    # Test 2: f32, larger tensor — exercises the zero-copy multi-block grid
    # (lane_w=2048, grid of 2 parallel steps).
    k1 = jax.random.PRNGKey(1)
    xb = jax.random.normal(k1, (2, 128, 256), dtype=jnp.float32) * 2.0
    yb = jax.block_until_ready(int_gelu(xb, scaling_factor, quant_mode="symmetric"))
    yb_ref = _int_gelu_reference(xb, scaling_factor)
    assert yb.shape == xb.shape and yb.dtype == xb.dtype
    assert jnp.allclose(yb, yb_ref, rtol=1e-5, atol=1e-5), "multi-block mismatch vs reference"

    # Test 3: bf16 + ragged total — exercises the pad fallback + in-kernel casts.
    k2 = jax.random.PRNGKey(2)
    x2 = (jax.random.normal(k2, (3, 5, 20), dtype=jnp.float32) * 2.0).astype(jnp.bfloat16)
    y2 = jax.block_until_ready(int_gelu(x2, scaling_factor, quant_mode="symmetric"))
    y2_ref = _int_gelu_reference(x2.astype(jnp.float32), scaling_factor)
    assert y2.shape == x2.shape and y2.dtype == x2.dtype
    assert jnp.allclose(y2.astype(jnp.float32), y2_ref, rtol=2e-2, atol=2e-2), \
        "bf16 mismatch vs reference"

    # Test 4: 'none' mode falls back to exact GELU.
    y4 = jax.block_until_ready(int_gelu(x, None, quant_mode="none"))
    assert jnp.allclose(y4, jax.nn.gelu(x, approximate=False), rtol=1e-6, atol=1e-6)

    print("KERNEL_OK")
</pallas_src>

<mosaic_0001>
module attributes {stable_mosaic.version = 11 : i64} {
  func.func @_int_gelu_kernel(%arg0: i32, %arg1: memref<5xf32, #tpu.memory_space<smem>>, %arg2: memref<1x512xf32, #tpu.memory_space<vmem>>, %arg3: memref<1x512xf32, #tpu.memory_space<vmem>>) attributes {dimension_semantics = [#tpu.dimension_semantics<parallel>], iteration_bounds = array<i64: 1>, scalar_prefetch = 1 : i64, scratch_operands = 0 : i64, tpu.core_type = #tpu.core_type<tc>, window_params = [{transform_indices = @transform_0, window_bounds = array<i64: 1, 512>}, {transform_indices = @transform_1, window_bounds = array<i64: 1, 512>}]} {
    %c0 = arith.constant 0 : index
    %0 = memref.load %arg1[%c0] : memref<5xf32, #tpu.memory_space<smem>>
    %c1 = arith.constant 1 : index
    %1 = memref.load %arg1[%c1] : memref<5xf32, #tpu.memory_space<smem>>
    %c2 = arith.constant 2 : index
    %2 = memref.load %arg1[%c2] : memref<5xf32, #tpu.memory_space<smem>>
    %c3 = arith.constant 3 : index
    %3 = memref.load %arg1[%c3] : memref<5xf32, #tpu.memory_space<smem>>
    %c4 = arith.constant 4 : index
    %4 = memref.load %arg1[%c4] : memref<5xf32, #tpu.memory_space<smem>>
    %c0_0 = arith.constant 0 : index
    %c0_1 = arith.constant 0 : index
    %5 = vector.load %arg2[%c0_0, %c0_1] : memref<1x512xf32, #tpu.memory_space<vmem>>, vector<1x512xf32>
    %6 = vector.broadcast %0 : f32 to vector<1x512xf32>
    %7 = arith.mulf %5, %6 : vector<1x512xf32>
    %8 = math.absf %7 : vector<1x512xf32>
    %cst = arith.constant 0.000000e+00 : f32
    %9 = arith.subf %cst, %1 : f32
    %10 = vector.broadcast %9 : f32 to vector<1x512xf32>
    %11 = arith.minimumf %8, %10 : vector<1x512xf32>
    %12 = vector.broadcast %1 : f32 to vector<1x512xf32>
    %13 = arith.addf %11, %12 : vector<1x512xf32>
    %14 = arith.mulf %13, %13 : vector<1x512xf32>
    %15 = vector.broadcast %2 : f32 to vector<1x512xf32>
    %16 = arith.addf %14, %15 : vector<1x512xf32>
    %cst_2 = arith.constant 0.000000e+00 : f32
    %17 = vector.broadcast %cst_2 : f32 to vector<1x512xf32>
    %18 = arith.cmpf olt, %7, %17 : vector<1x512xf32>
    %cst_3 = arith.constant 0.000000e+00 : f32
    %19 = vector.broadcast %cst_3 : f32 to vector<1x512xf32>
    %20 = arith.subf %19, %16 : vector<1x512xf32>
    %21 = arith.select %18, %20, %16 : vector<1x512xi1>, vector<1x512xf32>
    %22 = math.floor %21 : vector<1x512xf32>
    %23 = vector.broadcast %3 : f32 to vector<1x512xf32>
    %24 = arith.addf %22, %23 : vector<1x512xf32>
    %25 = arith.mulf %7, %24 : vector<1x512xf32>
    %26 = vector.broadcast %4 : f32 to vector<1x512xf32>
    %27 = arith.mulf %25, %26 : vector<1x512xf32>
    %c0_4 = arith.constant 0 : index
    %c0_5 = arith.constant 0 : index
    %28 = vector.load %arg3[%c0_4, %c0_5] : memref<1x512xf32, #tpu.memory_space<vmem>>, vector<1x512xf32>
    tpu.vector_store %arg3[%c0_4, %c0_5], %27 {strides = array<i32>} : memref<1x512xf32, #tpu.memory_space<vmem>>, vector<1x512xf32>,
    return
  }
  func.func @transform_0(%arg0: i32, %arg1: memref<5xf32, #tpu.memory_space<smem>>) -> (i32, i32) {
    %c0_i32 = arith.constant 0 : i32
    %c0_i32_0 = arith.constant 0 : i32
    return %arg0, %c0_i32 : i32, i32
  }
  func.func @transform_1(%arg0: i32, %arg1: memref<5xf32, #tpu.memory_space<smem>>) -> (i32, i32) {
    %c0_i32 = arith.constant 0 : i32
    %c0_i32_0 = arith.constant 0 : i32
    return %arg0, %c0_i32 : i32, i32
  }
}

</mosaic_0001>

<llo_original>
// kernel: tpu_custom_call.1
$region0: #{tpu_custom_call.1}
  #allocation0 [shape = 'u32[]', space=smem, size = 0x4, offset = 0x4, fixed_abs, tag = 'smem constant byte address 0x4 - core index']
  #allocation1 [shape = 'u32[144,128]{1,0:T(1,128)}', space=vmem, size = 0x12000, scoped, tag = 'internal scratch']
  #allocation2 [shape = 's32[1]{0}', space=sflag, size = 0x4, scoped, tag = 'scoped memory for tpu_custom_call.1']
  #allocation3 [shape = 'u8[512]{0}', space=smem, size = 0x200, scoped, tag = 'prefetched SMEM operand 0']
  %s0 = inlined_call_operand.hbm [shape: f32[5], index: 0, kind: input, shape index: {}]
  %s1 = inlined_call_operand.hbm [shape: f32[1,512], index: 1, kind: input, shape index: {}]
  %s2 = inlined_call_operand.hbm [shape: f32[1,512], index: 2, kind: output, shape index: {}]
  %s3 = sld [smem:[#allocation0]]
  $region18: #{tpu_custom_call.1} parent=0
    _
  %s5 = ssub.s32 1, %s3
  %s6 = scalar_select 0, %s5, %s3
  %8 = dma.hbm_to_smem %s0, 16, [#allocation3], [#allocation2]
  %9 = dma.done [#allocation2], 16
  %10 = sfence
  $region1: #{tpu_custom_call.1} parent=0
    #allocation4 [shape = 'u8[2048]{0}', space=vmem, size = 0x800, scoped, tag = 'input window, operand 1, single buffered']
    #allocation5 [shape = 's32[1]{0}', space=sflag, size = 0x4, scoped, tag = 'scoped memory for tpu_custom_call.1']
    #allocation6 [shape = 's32[1]{0}', space=sflag, size = 0x4, scoped, tag = 'scoped memory for tpu_custom_call.1']
    #allocation7 [shape = 'u8[2048]{0}', space=vmem, size = 0x800, scoped, tag = 'output window, operand 0, single buffered']
    %11 = vsyncpa [#allocation5], 0
    %12 = vsyncpa [#allocation6], 0
    // Predicated region
    $region2: #{tpu_custom_call.1} parent=1 // pred_check
      _
    $region3: #{tpu_custom_call.1} parent=1 // pred_check_branch
      %14 = sbr.rel (0) target = $region5
    $region4: #{tpu_custom_call.1} parent=1 // pred_region
      %s16 = ssub.s32 64, 64
      %17 = vsyncadd [#allocation5], %s16
      %s19 = sshll.u32 [#allocation4], 4
      %s20 = int_to_ptr.vmem [resolvable:$true] %s19
      %22 = dma.hbm_to_vmem [thread:$0]  %s1, 64, %s20, [#allocation5]
    $region5: #{tpu_custom_call.1} parent=1 // pred_fallthru
      _
    // Predicated region
    $region6: #{tpu_custom_call.1} parent=1 // pred_check
      _
    $region7: #{tpu_custom_call.1} parent=1 // pred_check_branch
      %24 = sbr.rel (0) target = $region9
    $region8: #{tpu_custom_call.1} parent=1 // pred_region
      %25 = dma.done [#allocation5], 64
    $region9: #{tpu_custom_call.1} parent=1 // pred_fallthru
      _
    %s26 = sld [smem:[#allocation3]]
    %s27 = sld [smem:[#allocation3 + $0x1]]
    %s28 = sld [smem:[#allocation3 + $0x2]]
    %s29 = sld [smem:[#allocation3 + $0x3]]
    %s30 = sld [smem:[#allocation3 + $0x4]]
    %v31 = vld [vmem:[#allocation4] sm:$0xf]
    %v32 = vstv %s26
    %v33 = vmul.f32 %v31, %v32
    %v34 = vand.u32 2147483647, %v33
    %s35 = ssub.f32 0.0, %s27
    %v36 = vstv %s35
    %v37 = vmin.f32 %v34, %v36
    %v38 = vstv %s27
    %v39 = vadd.f32 %v37, %v38
    %v40 = vmul.f32 %v39, %v39
    %v41 = vstv %s28
    %v42 = vadd.f32 %v40, %v41
    %vm43 = vcmp.lt.f32.partialorder %v33, 0.0
    %v44 = vsub.f32 0.0, %v42
    %v45 = vsel %vm43, %v44, %v42
    %v46 = vfloor.f32 %v45
    %v47 = vstv %s29
    %v48 = vadd.f32 %v46, %v47
    %v49 = vmul.f32 %v33, %v48
    %v50 = vstv %s30
    %v51 = vmul.f32 %v49, %v50
    %v52 = vlaneseq
    %vm53 = vcmp.ge.s32.totalorder %v52, 0
    %vm54 = vcmp.lt.s32.totalorder %v52, 512
    %vm55 = vmand %vm53, %vm54
    %56 = vst.msk [vmem:[#allocation7] sm:$0xf] %vm55, %v51
    // Predicated region
    $region10: #{tpu_custom_call.1} parent=1 // pred_check
      _
    $region11: #{tpu_custom_call.1} parent=1 // pred_check_branch
      %58 = sbr.rel (0) target = $region13
    $region12: #{tpu_custom_call.1} parent=1 // pred_region
      %s60 = ssub.s32 64, 64
      %61 = vsyncadd [#allocation6], %s60
      %s63 = sshll.u32 [#allocation7], 4
      %s64 = int_to_ptr.vmem [resolvable:$true] %s63
      %66 = dma.vmem_to_hbm [thread:$0]  %s64, 64, %s2, [#allocation6]
    $region13: #{tpu_custom_call.1} parent=1 // pred_fallthru
      _
    // Predicated region
    $region14: #{tpu_custom_call.1} parent=1 // pred_check
      _
    $region15: #{tpu_custom_call.1} parent=1 // pred_check_branch
      %68 = sbr.rel (0) target = $region17
    $region16: #{tpu_custom_call.1} parent=1 // pred_region
      %69 = dma.done [#allocation6], 64
    $region17: #{tpu_custom_call.1} parent=1 // pred_fallthru
      _
    %70 = vsyncpa [#allocation5], 1
    %71 = vsyncpa [#allocation6], 1

</llo_original>
